<compile_context>
chip_gen: v7x
topology: tpu7x:2x2x1
jax: 0.10.0
libtpu: 0.0.40
codegen_flags: <defaults>
</compile_context>

<pallas_src>
import functools

import jax
import jax.numpy as jnp
from jax.experimental import pallas as pl
from jax.experimental.pallas import tpu as pltpu


def _conv_bias_maxmin_kernel(x_lo_ref, x_hi_ref, w_ref, b_ref, o_ref, *, K, Wp,
                             fuse_taps):
    # x_lo_ref: (1, Cin_p, CHUNK)   flattened padded input, chunk r            (bf16)
    # x_hi_ref: (1, Cin_p, HALO)    halo tail right after chunk r              (bf16)
    # w_ref:    fused   -> (Cout_p, K*K*Cin_p)  tap-major / channel-minor rows (bf16)
    #           unfused -> (K*K, Cout_p, Cin_p) per-tap weight slabs           (bf16)
    # b_ref:    (Cout_p, 1)         bias column (f32, broadcast along lanes)
    # o_ref:    (1, Cout_p, CHUNK)  channel-major output chunk (lane-dense)
    cin = x_lo_ref.shape[1]
    cout, chunk = o_ref.shape[1], o_ref.shape[2]
    half = cout // 2

    # (Cin_p, CHUNK + HALO) window.  HALO >= max tap offset, so every tap of every
    # output position in this chunk is covered.  Lane concat at a 128-aligned
    # boundary: cheap; and only halo/chunk extra bytes are re-fetched from HBM.
    xw = jnp.concatenate([x_lo_ref[0], x_hi_ref[0]], axis=-1)

    if fuse_taps:
        # Small Cin: fold all K*K taps into the contraction dim.  Each tap is a
        # *static* lane-shifted slice (flattened padded layout => conv is a pure
        # shift), stacked along sublanes -> one fat MXU matmul.
        pieces = []
        for kh in range(K):
            for kw in range(K):
                off = kh * Wp + kw
                pieces.append(xw[:, off:off + chunk])              # (Cin_p, CHUNK)
            # rows ordered (kh, kw, cin) to match w_ref's column order
        patches = jnp.concatenate(pieces, axis=0)                  # (K*K*Cin_p, CHUNK)
        acc = jnp.dot(w_ref[...], patches, preferred_element_type=jnp.float32)
    else:
        # Large Cin: the contraction already fills the MXU; skip the patches buffer
        # (K^2 store amplification) and accumulate K*K matmuls on shifted slices.
        acc = jnp.zeros((cout, chunk), jnp.float32)
        for kh in range(K):
            for kw in range(K):
                off = kh * Wp + kw
                acc = acc + jnp.dot(w_ref[kh * K + kw], xw[:, off:off + chunk],
                                    preferred_element_type=jnp.float32)

    # Bias as a broadcasting add of the (Cout_p, 1) column onto the MXU result.
    acc = acc + b_ref[...]

    # MaxMin (GroupSort-2): channel halves are a sublane split (half is a multiple
    # of the f32 sublane tile by construction) -> two unmasked lane-dense stores.
    a = acc[:half, :]
    b = acc[half:, :]
    o_ref[0, :half, :] = jnp.maximum(a, b).astype(o_ref.dtype)
    o_ref[0, half:, :] = jnp.minimum(a, b).astype(o_ref.dtype)


def normalize_forward(x_nchw, w_oihw, bias, *, chunk=2048, mxu_dtype=jnp.bfloat16):
    """Forward pass of `Normalize` (= LipBlock): MaxMin(Conv2d(x)), fused in Pallas.

    chunk: flattened output positions per grid step (rounded to a multiple of the
      halo tile, clamped to the image size).  2048 amortizes the ~0.35us per-step
      overhead; raise toward 8192 for very large images (the explicit
      vmem_limit_bytes below is sized from the real footprint, so it stays v7x-safe).
    mxu_dtype: dtype of the MXU operands (accumulation is always f32).  bf16 is the
      fast path on all generations; pass jnp.float32 for bit-tight matching.
    """
    N, Cin, H, W = x_nchw.shape
    Cout, Cin_w, K, K2 = w_oihw.shape
    assert Cin_w == Cin and K2 == K
    assert K % 2 == 1, "padding=K//2 'same' conv only matches PyTorch for odd K"
    assert Cout % 2 == 0, "MaxMin activation requires an even number of channels"
    pad = K // 2
    Hp, Wp = H + 2 * pad, W + 2 * pad

    in_elt = jnp.dtype(mxu_dtype).itemsize
    out_elt = jnp.dtype(x_nchw.dtype).itemsize
    sub_in = 8 * (4 // in_elt)            # sublane tile of the MXU operand dtype
    Cin_p = sub_in * pl.cdiv(Cin, sub_in)
    half = Cout // 2
    half_p = 8 * pl.cdiv(half, 8)         # f32 accumulator / output sublane tile
    Cout_p = 2 * half_p

    # Largest tap offset in the flattened padded layout; the halo block (a whole
    # number of 128-lane tiles) must cover it.
    off_max = (K - 1) * Wp + (K - 1)
    halo = 128 * pl.cdiv(off_max, 128)
    needed = halo * pl.cdiv(H * Wp, halo)              # spatial size, halo-aligned
    chunk = halo * pl.cdiv(max(chunk, halo), halo)     # multiple of the halo tile
    chunk = min(chunk, needed)                         # don't over-pad tiny images
    R = pl.cdiv(H * Wp, chunk)                         # spatial grid extent
    cph = chunk // halo                                # halo blocks per chunk
    L_total = (R + 1) * chunk                          # zero tail covers halo fetch
    assert L_total >= R * chunk + halo and L_total >= Hp * Wp

    # NCHW stays channel-major: cast to the MXU dtype, zero-pad channels to the
    # sublane tile, pad spatially, flatten (h, w_p) onto the lane axis, zero-extend.
    x_pad = jnp.pad(x_nchw.astype(mxu_dtype),
                    ((0, 0), (0, Cin_p - Cin), (pad, pad), (pad, pad)))
    x_flat = x_pad.reshape(N, Cin_p, Hp * Wp)
    x_flat = jnp.pad(x_flat, ((0, 0), (0, 0), (0, L_total - Hp * Wp)))

    # Weights: (Cout, Cin, K, K) -> taps-major rows, channels padded to Cin_p and
    # the two MaxMin halves each padded to half_p (so the sublane split is aligned).
    w_t = jnp.transpose(w_oihw, (0, 2, 3, 1))                        # (Cout,K,K,Cin)
    w_t = jnp.pad(w_t, ((0, 0), (0, 0), (0, 0), (0, Cin_p - Cin)))
    w_t = jnp.concatenate(
        [jnp.pad(w_t[:half], ((0, half_p - half), (0, 0), (0, 0), (0, 0))),
         jnp.pad(w_t[half:], ((0, half_p - half), (0, 0), (0, 0), (0, 0)))],
        axis=0)                                                      # (Cout_p,K,K,Cin_p)
    b_col = jnp.concatenate(
        [jnp.pad(bias[:half], (0, half_p - half)),
         jnp.pad(bias[half:], (0, half_p - half))]).reshape(Cout_p, 1)
    b_col = b_col.astype(jnp.float32)

    # Fused patch matmul only while Cin is too small to fill the MXU contraction.
    fuse_taps = Cin_p < 128
    if fuse_taps:
        w_arg = w_t.reshape(Cout_p, K * K * Cin_p).astype(mxu_dtype)
        w_spec = pl.BlockSpec((Cout_p, K * K * Cin_p), lambda n, r: (0, 0))
    else:
        w_arg = (jnp.transpose(w_t, (1, 2, 0, 3))
                 .reshape(K * K, Cout_p, Cin_p).astype(mxu_dtype))
        w_spec = pl.BlockSpec((K * K, Cout_p, Cin_p), lambda n, r: (0, 0, 0))

    kernel = functools.partial(_conv_bias_maxmin_kernel, K=K, Wp=Wp,
                               fuse_taps=fuse_taps)

    # Per-step VMEM footprint (double-buffered blocks + in-kernel temporaries),
    # with 2x headroom, clamped to [32 MiB, 64 MiB] so it is v7x-safe.
    vmem_bytes = (
        2 * Cin_p * (chunk + halo) * in_elt            # dbl-buffered lo + halo blocks
        + 2 * Cout_p * chunk * out_elt                 # dbl-buffered output blocks
        + 2 * (Cout_p * K * K * Cin_p * in_elt + Cout_p * 4)   # weights + bias
        + Cin_p * (chunk + halo) * in_elt              # xw window
        + (K * K * Cin_p * chunk * in_elt if fuse_taps else 0)  # patches
        + 3 * Cout_p * chunk * 4                       # f32 acc + maxmin temporaries
    )
    vmem_limit = int(min(64 * 1024 * 1024, max(32 * 1024 * 1024, 2 * vmem_bytes)))

    cost = pl.CostEstimate(
        flops=2 * N * R * chunk * Cout_p * K * K * Cin_p,
        transcendentals=0,
        bytes_accessed=int(x_flat.size * in_elt + w_arg.size * in_elt
                           + Cout_p * 4 + N * Cout_p * R * chunk * out_elt),
    )

    out_flat = pl.pallas_call(
        kernel,
        out_shape=jax.ShapeDtypeStruct((N, Cout_p, R * chunk), x_nchw.dtype),
        grid_spec=pltpu.PrefetchScalarGridSpec(
            num_scalar_prefetch=0,
            grid=(N, R),
            in_specs=[
                # chunk r of the flattened input.
                pl.BlockSpec((1, Cin_p, chunk), lambda n, r: (n, 0, r)),
                # halo-sized tail immediately after chunk r (same array, small block).
                pl.BlockSpec((1, Cin_p, halo), lambda n, r: (n, 0, (r + 1) * cph)),
                w_spec,
                pl.BlockSpec((Cout_p, 1), lambda n, r: (0, 0)),
            ],
            out_specs=pl.BlockSpec((1, Cout_p, chunk), lambda n, r: (n, 0, r)),
        ),
        compiler_params=pltpu.CompilerParams(
            dimension_semantics=("parallel", "parallel"),
            vmem_limit_bytes=vmem_limit,
        ),
        cost_estimate=cost,
    )(x_flat, x_flat, w_arg, b_col)

    # Drop padded-width garbage columns (w_p >= W); output is already NCHW.
    out = out_flat[:, :, : H * Wp].reshape(N, Cout_p, H, Wp)[:, :, :, :W]
    if half_p != half:
        # Remove the padded channels of each MaxMin half (tiny Cout only).
        out = jnp.concatenate([out[:, :half], out[:, half_p:half_p + half]], axis=1)
    return out


def _reference_forward(x_nchw, w_oihw, bias, compute_dtype=jnp.float32):
    """Pure-JAX reference (lax conv + MaxMin) for correctness checking."""
    K = w_oihw.shape[2]
    pad = K // 2
    y = jax.lax.conv_general_dilated(
        x_nchw.astype(compute_dtype), w_oihw.astype(compute_dtype),
        window_strides=(1, 1), padding=[(pad, pad), (pad, pad)],
        dimension_numbers=("NCHW", "OIHW", "NCHW"),
        preferred_element_type=jnp.float32,
    ) + bias[None, :, None, None]
    half = y.shape[1] // 2
    a, b = y[:, :half], y[:, half:]
    return jnp.concatenate([jnp.maximum(a, b), jnp.minimum(a, b)],
                           axis=1).astype(x_nchw.dtype)


if __name__ == "__main__":
    # Small, module-consistent shapes:
    #   batch=2, in_channels=4, out_channels=8, H=W=16, kernel_size=3, stride=1
    N, Cin, Cout, H, W, K = 2, 4, 8, 16, 16, 3

    key = jax.random.PRNGKey(0)
    kx, kw, kb = jax.random.split(key, 3)

    x = jax.random.normal(kx, (N, Cin, H, W), dtype=jnp.float32)
    # Deterministic Conv2d-style init: U(-b, b) with b = 1/sqrt(Cin*K*K).
    bound = 1.0 / jnp.sqrt(jnp.float32(Cin * K * K))
    w = jax.random.uniform(kw, (Cout, Cin, K, K), jnp.float32, -bound, bound)
    b = jax.random.uniform(kb, (Cout,), jnp.float32, -bound, bound)

    out = normalize_forward(x, w, b)   # bf16 MXU operands, f32 accumulation
    out = jax.block_until_ready(out)
    assert out.shape == (N, Cout, H, W)

    # Tight check vs a reference that uses the same bf16 operands + f32 accumulation.
    ref_bf16 = _reference_forward(x, w, b, compute_dtype=jnp.bfloat16)
    assert jnp.allclose(out, ref_bf16, atol=2e-3, rtol=2e-3), "mismatch vs bf16 ref"

    # Looser sanity check vs the exact f32 PyTorch-equivalent reference.
    ref_f32 = _reference_forward(x, w, b, compute_dtype=jnp.float32)
    assert jnp.allclose(out, ref_f32, atol=5e-2, rtol=5e-2), "mismatch vs f32 ref"

    print("KERNEL_OK")
</pallas_src>

<mosaic_0001>
module attributes {stable_mosaic.version = 11 : i64} {
  func.func @_conv_bias_maxmin_kernel(%arg0: i32, %arg1: i32, %arg2: memref<1x16x384xbf16, #tpu.memory_space<vmem>>, %arg3: memref<1x16x128xbf16, #tpu.memory_space<vmem>>, %arg4: memref<16x144xbf16, #tpu.memory_space<vmem>>, %arg5: memref<16x1xf32, #tpu.memory_space<vmem>>, %arg6: memref<1x16x384xf32, #tpu.memory_space<vmem>>) attributes {dimension_semantics = [#tpu.dimension_semantics<parallel>, #tpu.dimension_semantics<parallel>], iteration_bounds = array<i64: 2, 1>, scalar_prefetch = 0 : i64, scratch_operands = 0 : i64, tpu.core_type = #tpu.core_type<tc>, window_params = [{transform_indices = @transform_0, window_bounds = array<i64: 1, 16, 384>}, {transform_indices = @transform_1, window_bounds = array<i64: 1, 16, 128>}, {pipeline_mode = #tpu.pipeline_mode<synchronous>, transform_indices = @transform_2, window_bounds = array<i64: 16, 144>}, {pipeline_mode = #tpu.pipeline_mode<synchronous>, transform_indices = @transform_3, window_bounds = array<i64: 16, 1>}, {transform_indices = @transform_4, window_bounds = array<i64: 1, 16, 384>}]} {
    %c0 = arith.constant 0 : index
    %c0_0 = arith.constant 0 : index
    %c0_1 = arith.constant 0 : index
    %0 = vector.load %arg2[%c0, %c0_0, %c0_1] : memref<1x16x384xbf16, #tpu.memory_space<vmem>>, vector<1x16x384xbf16>
    %1 = vector.shape_cast %0 : vector<1x16x384xbf16> to vector<16x384xbf16>
    %c0_2 = arith.constant 0 : index
    %c0_3 = arith.constant 0 : index
    %c0_4 = arith.constant 0 : index
    %2 = vector.load %arg3[%c0_2, %c0_3, %c0_4] : memref<1x16x128xbf16, #tpu.memory_space<vmem>>, vector<1x16x128xbf16>
    %3 = vector.shape_cast %2 : vector<1x16x128xbf16> to vector<16x128xbf16>
    %4 = tpu.concatenate %1, %3 in 1 : vector<16x384xbf16>, vector<16x128xbf16> -> vector<16x512xbf16>
    %5 = vector.extract_strided_slice %4 {offsets = [0, 0], sizes = [16, 384], strides = [1, 1]} : vector<16x512xbf16> to vector<16x384xbf16>
    %6 = vector.extract_strided_slice %4 {offsets = [0, 1], sizes = [16, 384], strides = [1, 1]} : vector<16x512xbf16> to vector<16x384xbf16>
    %7 = vector.extract_strided_slice %4 {offsets = [0, 2], sizes = [16, 384], strides = [1, 1]} : vector<16x512xbf16> to vector<16x384xbf16>
    %8 = vector.extract_strided_slice %4 {offsets = [0, 18], sizes = [16, 384], strides = [1, 1]} : vector<16x512xbf16> to vector<16x384xbf16>
    %9 = vector.extract_strided_slice %4 {offsets = [0, 19], sizes = [16, 384], strides = [1, 1]} : vector<16x512xbf16> to vector<16x384xbf16>
    %10 = vector.extract_strided_slice %4 {offsets = [0, 20], sizes = [16, 384], strides = [1, 1]} : vector<16x512xbf16> to vector<16x384xbf16>
    %11 = vector.extract_strided_slice %4 {offsets = [0, 36], sizes = [16, 384], strides = [1, 1]} : vector<16x512xbf16> to vector<16x384xbf16>
    %12 = vector.extract_strided_slice %4 {offsets = [0, 37], sizes = [16, 384], strides = [1, 1]} : vector<16x512xbf16> to vector<16x384xbf16>
    %13 = vector.extract_strided_slice %4 {offsets = [0, 38], sizes = [16, 384], strides = [1, 1]} : vector<16x512xbf16> to vector<16x384xbf16>
    %14 = tpu.concatenate %5, %6, %7, %8, %9, %10, %11, %12, %13 in 0 : vector<16x384xbf16>, vector<16x384xbf16>, vector<16x384xbf16>, vector<16x384xbf16>, vector<16x384xbf16>, vector<16x384xbf16>, vector<16x384xbf16>, vector<16x384xbf16>, vector<16x384xbf16> -> vector<144x384xbf16>
    %c0_5 = arith.constant 0 : index
    %c0_6 = arith.constant 0 : index
    %15 = vector.load %arg4[%c0_5, %c0_6] : memref<16x144xbf16, #tpu.memory_space<vmem>>, vector<16x144xbf16>
    %cst = arith.constant dense<0.000000e+00> : vector<16x384xf32>
    %16 = tpu.matmul %15, %14, %cst {dimension_numbers = #tpu.dot_dimension_numbers<[1], [0], [0], [1], [0, 0, 1, 1], [], []>} : vector<16x144xbf16>, vector<144x384xbf16>, vector<16x384xf32> -> vector<16x384xf32>
    %c0_7 = arith.constant 0 : index
    %c0_8 = arith.constant 0 : index
    %17 = vector.load %arg5[%c0_7, %c0_8] : memref<16x1xf32, #tpu.memory_space<vmem>>, vector<16x1xf32>
    %18 = vector.broadcast %17 : vector<16x1xf32> to vector<16x384xf32>
    %19 = arith.addf %16, %18 : vector<16x384xf32>
    %20 = vector.extract_strided_slice %19 {offsets = [0, 0], sizes = [8, 384], strides = [1, 1]} : vector<16x384xf32> to vector<8x384xf32>
    %21 = vector.extract_strided_slice %19 {offsets = [8, 0], sizes = [8, 384], strides = [1, 1]} : vector<16x384xf32> to vector<8x384xf32>
    %22 = arith.maximumf %20, %21 : vector<8x384xf32>
    %c0_9 = arith.constant 0 : index
    %c0_10 = arith.constant 0 : index
    %c0_11 = arith.constant 0 : index
    %23 = vector.load %arg6[%c0_9, %c0_10, %c0_11] : memref<1x16x384xf32, #tpu.memory_space<vmem>>, vector<1x8x384xf32>
    %24 = vector.shape_cast %23 : vector<1x8x384xf32> to vector<8x384xf32>
    %25 = vector.shape_cast %22 : vector<8x384xf32> to vector<1x8x384xf32>
    tpu.vector_store %arg6[%c0_9, %c0_10, %c0_11], %25 {strides = array<i32>} : memref<1x16x384xf32, #tpu.memory_space<vmem>>, vector<1x8x384xf32>,
    %26 = arith.minimumf %20, %21 : vector<8x384xf32>
    %c0_12 = arith.constant 0 : index
    %c8 = arith.constant 8 : index
    %c0_13 = arith.constant 0 : index
    %27 = vector.load %arg6[%c0_12, %c8, %c0_13] : memref<1x16x384xf32, #tpu.memory_space<vmem>>, vector<1x8x384xf32>
    %28 = vector.shape_cast %27 : vector<1x8x384xf32> to vector<8x384xf32>
    %29 = vector.shape_cast %26 : vector<8x384xf32> to vector<1x8x384xf32>
    tpu.vector_store %arg6[%c0_12, %c8, %c0_13], %29 {strides = array<i32>} : memref<1x16x384xf32, #tpu.memory_space<vmem>>, vector<1x8x384xf32>,
    return
  }
  func.func @transform_0(%arg0: i32, %arg1: i32) -> (i32, i32, i32) {
    %c0_i32 = arith.constant 0 : i32
    %c0_i32_0 = arith.constant 0 : i32
    return %arg0, %c0_i32, %arg1 : i32, i32, i32
  }
  func.func @transform_1(%arg0: i32, %arg1: i32) -> (i32, i32, i32) {
    %c1_i32 = arith.constant 1 : i32
    %0 = arith.addi %arg1, %c1_i32 : i32
    %c3_i32 = arith.constant 3 : i32
    %1 = arith.muli %0, %c3_i32 : i32
    %c0_i32 = arith.constant 0 : i32
    %c0_i32_0 = arith.constant 0 : i32
    return %arg0, %c0_i32, %1 : i32, i32, i32
  }
  func.func @transform_2(%arg0: i32, %arg1: i32) -> (i32, i32) {
    %c0_i32 = arith.constant 0 : i32
    %c0_i32_0 = arith.constant 0 : i32
    %c0_i32_1 = arith.constant 0 : i32
    return %c0_i32, %c0_i32_0 : i32, i32
  }
  func.func @transform_3(%arg0: i32, %arg1: i32) -> (i32, i32) {
    %c0_i32 = arith.constant 0 : i32
    %c0_i32_0 = arith.constant 0 : i32
    %c0_i32_1 = arith.constant 0 : i32
    return %c0_i32, %c0_i32_0 : i32, i32
  }
  func.func @transform_4(%arg0: i32, %arg1: i32) -> (i32, i32, i32) {
    %c0_i32 = arith.constant 0 : i32
    %c0_i32_0 = arith.constant 0 : i32
    return %arg0, %c0_i32, %arg1 : i32, i32, i32
  }
}

</mosaic_0001>

<llo_original>
// kernel: tpu_custom_call.1
$region0: #{tpu_custom_call.1}
  #allocation0 [shape = 'u32[]', space=smem, size = 0x4, offset = 0x4, fixed_abs, tag = 'smem constant byte address 0x4 - core index']
  #allocation1 [shape = 'u32[144,128]{1,0:T(1,128)}', space=vmem, size = 0x12000, scoped, tag = 'internal scratch']
  %s0 = inlined_call_operand.hbm [shape: bf16[2,16,768], index: 0, kind: input, shape index: {}]
  %s1 = inlined_call_operand.hbm [shape: bf16[2,16,768], index: 1, kind: input, shape index: {}]
  %s2 = inlined_call_operand.vmem [shape: bf16[16,144], index: 2, kind: input, shape index: {}]
  %s3 = inlined_call_operand.vmem [shape: f32[16,1], index: 3, kind: input, shape index: {}]
  %s4 = inlined_call_operand.hbm [shape: f32[2,16,384], index: 4, kind: output, shape index: {}]
  %s5 = sld [smem:[#allocation0]]
  $region57: #{tpu_custom_call.1} parent=0
    _
  %s7 = ssub.s32 1, %s5
  %s8 = scalar_select 0, %s7, %s5
  $region1: #{tpu_custom_call.1} parent=0
    #allocation2 [shape = 'u8[24576]{0}', space=vmem, size = 0x6000, scoped, tag = 'input window, operand 0']
    #allocation3 [shape = 's32[2]{0}', space=sflag, size = 0x8, scoped, tag = 'scoped memory for tpu_custom_call.1']
    #allocation4 [shape = 's32[2]{0}', space=sflag, size = 0x8, scoped, tag = 'scoped memory for tpu_custom_call.1']
    #allocation5 [shape = 'u8[8192]{0}', space=vmem, size = 0x2000, scoped, tag = 'input window, operand 1']
    #allocation6 [shape = 's32[2]{0}', space=sflag, size = 0x8, scoped, tag = 'scoped memory for tpu_custom_call.1']
    #allocation7 [shape = 'u8[49152]{0}', space=vmem, size = 0xc000, scoped, tag = 'output window, operand 0']
    %9 = vsyncpa [#allocation3], 0
    %s10 = scalar_lea.sflag [#allocation3], 1
    %11 = vsyncpa %s10, 0
    %12 = vsyncpa [#allocation6], 0
    %s13 = scalar_lea.sflag [#allocation6], 1
    %14 = vsyncpa %s13, 0
    %15 = vsyncpa [#allocation4], 0
    %s16 = scalar_lea.sflag [#allocation4], 1
    %17 = vsyncpa %s16, 0
    loop: start=0, step=1, limit=4
    $region2: #{tpu_custom_call.1} parent=1 // loop_pre_header
      _
    $region3: #{tpu_custom_call.1} parent=1 // loop_header
      %s19 = sphi 0, %s23
      %p20 = scmp.ge.s32.totalorder %s19, 4
      %s26 = sphi 0, %s38
      %s27 = sphi 0, %s34
      %s28 = sphi 0, %s26
      %s29 = sphi 0, %s27
      %s30 = sphi 0, %s28
      %s31 = sphi 0, %s29
      %s43 = sphi 0, %s45
      %s46 = sphi 0, %s43
      %s47 = sphi 0, %s46
      %s63 = sphi 0, %s47
      %s75 = sphi 0, %s77
      %s78 = sphi 0, %s75
      %s79 = sphi 0, %s78
      %s95 = sphi 0, %s79
      %s99 = sphi 0, %s99
      %s101 = sphi 0, %s99
      %s102 = sphi 0, %s101
      %s116 = sphi 0, %s102
      %s120 = sphi 0, %s120
      %s122 = sphi 0, %s120
      %s123 = sphi 0, %s122
      %s137 = sphi 0, %s123
      %s145 = sphi 0, %s147
      %s148 = sphi 0, %s145
      %s149 = sphi 0, %s148
      %s165 = sphi 0, %s149
    $region4: #{tpu_custom_call.1} parent=1 // loop_header_branch
      %22 = sbr.rel (%p20) target = $region8
    $region5: #{tpu_custom_call.1} parent=1 // loop_body
      %s24 = ssub.s32 %s19, 1
      %s25 = ssub.s32 %s19, 2
      %s32 = sadd.s32 1, %s27
      %p33 = scmp.ge.s32.totalorder %s32, 1
      %s34 = scalar_select %p33, 0, %s32
      %s35 = sadd.s32 1, %s26
      %s36 = scalar_select %p33, %s35, %s26
      %p37 = scmp.ge.s32.totalorder %s36, 2
      %s38 = scalar_select %p37, 0, %s36
      %s39 = ssub.s32 %s26, %s38
      %s40 = ssub.s32 %s27, %s34
      %s41 = sor.u32 %s39, %s40
      %p42 = scmp.eq.s32.totalorder %s41, 0
      %s44 = sadd.s32 %s43, 1
      %s45 = scalar_select %p42, %s43, %s44
      %p48 = pneg %p42
      %p49 = scmp.eq.s32.totalorder %s19, 1
      %p50 = por %p48, %p49
      %p51 = scmp.ne.s32.totalorder %s43, %s46
      %p52 = scmp.eq.s32.totalorder %s19, 0
      %p53 = por %p51, %p52
      %p54 = scmp.ne.s32.totalorder %s43, %s46
      %p55 = scmp.eq.s32.totalorder %s24, 1
      %p56 = por %p54, %p55
      %p57 = scmp.ne.s32.totalorder %s46, %s47
      %p58 = scmp.eq.s32.totalorder %s24, 0
      %p59 = por %p57, %p58
      %p60 = scmp.ne.s32.totalorder %s46, %s47
      %p61 = scmp.eq.s32.totalorder %s25, 1
      %p62 = por %p60, %p61
      %p64 = scmp.ne.s32.totalorder %s47, %s63
      %p65 = scmp.eq.s32.totalorder %s25, 0
      %p66 = por %p64, %p65
      %s67 = sadd.s32 %s27, 1
      %s68 = smul.u32 %s67, 3
      %s69 = sadd.s32 %s34, 1
      %s70 = smul.u32 %s69, 3
      %s71 = ssub.s32 %s26, %s38
      %s72 = ssub.s32 %s68, %s70
      %s73 = sor.u32 %s71, %s72
      %p74 = scmp.eq.s32.totalorder %s73, 0
      %s76 = sadd.s32 %s75, 1
      %s77 = scalar_select %p74, %s75, %s76
      %p80 = pneg %p74
      %p81 = scmp.eq.s32.totalorder %s19, 1
      %p82 = por %p80, %p81
      %p83 = scmp.ne.s32.totalorder %s75, %s78
      %p84 = scmp.eq.s32.totalorder %s19, 0
      %p85 = por %p83, %p84
      %p86 = scmp.ne.s32.totalorder %s75, %s78
      %p87 = scmp.eq.s32.totalorder %s24, 1
      %p88 = por %p86, %p87
      %p89 = scmp.ne.s32.totalorder %s78, %s79
      %p90 = scmp.eq.s32.totalorder %s24, 0
      %p91 = por %p89, %p90
      %p92 = scmp.ne.s32.totalorder %s78, %s79
      %p93 = scmp.eq.s32.totalorder %s25, 1
      %p94 = por %p92, %p93
      %p96 = scmp.ne.s32.totalorder %s79, %s95
      %p97 = scmp.eq.s32.totalorder %s25, 0
      %p98 = por %p96, %p97
      %s100 = sadd.s32 %s99, 1
      %p103 = scmp.eq.s32.totalorder %s19, 1
      %p104 = scmp.ne.s32.totalorder %s99, %s101
      %p105 = scmp.eq.s32.totalorder %s19, 0
      %p106 = por %p104, %p105
      %p107 = scmp.ne.s32.totalorder %s99, %s101
      %p108 = scmp.eq.s32.totalorder %s24, 1
      %p109 = por %p107, %p108
      %p110 = scmp.ne.s32.totalorder %s101, %s102
      %p111 = scmp.eq.s32.totalorder %s24, 0
      %p112 = por %p110, %p111
      %p113 = scmp.ne.s32.totalorder %s101, %s102
      %p114 = scmp.eq.s32.totalorder %s25, 1
      %p115 = por %p113, %p114
      %p117 = scmp.ne.s32.totalorder %s102, %s116
      %p118 = scmp.eq.s32.totalorder %s25, 0
      %p119 = por %p117, %p118
      %s121 = sadd.s32 %s120, 1
      %p124 = scmp.eq.s32.totalorder %s19, 1
      %p125 = scmp.ne.s32.totalorder %s120, %s122
      %p126 = scmp.eq.s32.totalorder %s19, 0
      %p127 = por %p125, %p126
      %p128 = scmp.ne.s32.totalorder %s120, %s122
      %p129 = scmp.eq.s32.totalorder %s24, 1
      %p130 = por %p128, %p129
      %p131 = scmp.ne.s32.totalorder %s122, %s123
      %p132 = scmp.eq.s32.totalorder %s24, 0
      %p133 = por %p131, %p132
      %p134 = scmp.ne.s32.totalorder %s122, %s123
      %p135 = scmp.eq.s32.totalorder %s25, 1
      %p136 = por %p134, %p135
      %p138 = scmp.ne.s32.totalorder %s123, %s137
      %p139 = scmp.eq.s32.totalorder %s25, 0
      %p140 = por %p138, %p139
      %s141 = ssub.s32 %s26, %s38
      %s142 = ssub.s32 %s27, %s34
      %s143 = sor.u32 %s141, %s142
      %p144 = scmp.eq.s32.totalorder %s143, 0
      %s146 = sadd.s32 %s145, 1
      %s147 = scalar_select %p144, %s145, %s146
      %p150 = pneg %p144
      %p151 = scmp.eq.s32.totalorder %s19, 1
      %p152 = por %p150, %p151
      %p153 = scmp.ne.s32.totalorder %s145, %s148
      %p154 = scmp.eq.s32.totalorder %s19, 0
      %p155 = por %p153, %p154
      %p156 = scmp.ne.s32.totalorder %s145, %s148
      %p157 = scmp.eq.s32.totalorder %s24, 1
      %p158 = por %p156, %p157
      %p159 = scmp.ne.s32.totalorder %s148, %s149
      %p160 = scmp.eq.s32.totalorder %s24, 0
      %p161 = por %p159, %p160
      %p162 = scmp.ne.s32.totalorder %s148, %s149
      %p163 = scmp.eq.s32.totalorder %s25, 1
      %p164 = por %p162, %p163
      %p166 = scmp.ne.s32.totalorder %s149, %s165
      %p167 = scmp.eq.s32.totalorder %s25, 0
      %p168 = por %p166, %p167
      %p169 = scmp.le.s32.totalorder 1, %s19
      %p170 = scmp.lt.s32.totalorder %s19, 3
      %p171 = pnand %p169, %p170
      %p172 = pneg %p171
      // Predicated region
      $region9: #{tpu_custom_call.1} parent=5 // pred_check
        _
      $region10: #{tpu_custom_call.1} parent=5 // pred_check_branch
        %174 = sbr.rel (%p171) target = $region12
      $region11: #{tpu_custom_call.1} parent=5 // pred_region
        %s175 = ssub.s32 %s19, 1
        // Predicated region
        $region13: #{tpu_custom_call.1} parent=11 // pred_check
          %p176 = pneg %p112
        $region14: #{tpu_custom_call.1} parent=11 // pred_check_branch
          %178 = sbr.rel (%p176) target = $region16
        $region15: #{tpu_custom_call.1} parent=11 // pred_region
          _
        $region16: #{tpu_custom_call.1} parent=11 // pred_fallthru
          _
        // Predicated region
        $region17: #{tpu_custom_call.1} parent=11 // pred_check
          %p179 = pneg %p133
        $region18: #{tpu_custom_call.1} parent=11 // pred_check_branch
          %181 = sbr.rel (%p179) target = $region20
        $region19: #{tpu_custom_call.1} parent=11 // pred_region
          _
        $region20: #{tpu_custom_call.1} parent=11 // pred_fallthru
          _
      $region12: #{tpu_custom_call.1} parent=5 // pred_fallthru
        _
      %p182 = scmp.lt.s32.totalorder %s19, 2
      // Predicated region
      $region21: #{tpu_custom_call.1} parent=5 // pred_check
        %p183 = pneg %p182
      $region22: #{tpu_custom_call.1} parent=5 // pred_check_branch
        %185 = sbr.rel (%p183) target = $region24
      $region23: #{tpu_custom_call.1} parent=5 // pred_region
        // Predicated region
        $region25: #{tpu_custom_call.1} parent=23 // pred_check
          %p186 = pneg %p53
        $region26: #{tpu_custom_call.1} parent=23 // pred_check_branch
          %188 = sbr.rel (%p186) target = $region28
        $region27: #{tpu_custom_call.1} parent=23 // pred_region
          %s189 = sand.u32 %s43, 1
          %s190 = scalar_lea.sflag [#allocation3], %s189
          %s191 = sand.u32 %s43, 1
          %s192 = smul.addr %s191, 24
          %s193 = scalar_lea.vmem [#allocation2], %s192
          %s194 = smul.u32 3, %s27
          %s196 = ssub.s32 384, 384
          %197 = vsyncadd %s190, %s196
          %s198 = smul.addr %s26, 12
          %s199 = sadd.s32 %s194, %s198
          %s200 = smul.addr %s199, 64
          %s201 = scalar_lea.hbm %s0, %s200
          %s202 = sshll.u32 %s193, 4
          %s203 = int_to_ptr.vmem [resolvable:$true] %s202
          %208 = dma.hbm_to_vmem [thread:$0]  %s201, 384, %s203, %s190, 384, 192, 12
        $region28: #{tpu_custom_call.1} parent=23 // pred_fallthru
          _
        // Predicated region
        $region29: #{tpu_custom_call.1} parent=23 // pred_check
          %p209 = pneg %p85
        $region30: #{tpu_custom_call.1} parent=23 // pred_check_branch
          %211 = sbr.rel (%p209) target = $region32
        $region31: #{tpu_custom_call.1} parent=23 // pred_region
          %s212 = sand.u32 %s75, 1
          %s213 = scalar_lea.sflag [#allocation6], %s212
          %s214 = sand.u32 %s75, 1
          %s215 = smul.addr %s214, 8
          %s216 = scalar_lea.vmem [#allocation5], %s215
          %s217 = sadd.s32 %s27, 1
          %s218 = smul.u32 %s217, 3
          %s220 = ssub.s32 128, 128
          %221 = vsyncadd %s213, %s220
          %s222 = smul.addr %s26, 12
          %s223 = sadd.s32 %s218, %s222
          %s224 = smul.addr %s223, 64
          %s225 = scalar_lea.hbm %s1, %s224
          %s226 = sshll.u32 %s216, 4
          %s227 = int_to_ptr.vmem [resolvable:$true] %s226
          %232 = dma.hbm_to_vmem [thread:$0]  %s225, 128, %s227, %s213, 384, 64, 4
        $region32: #{tpu_custom_call.1} parent=23 // pred_fallthru
          _
      $region24: #{tpu_custom_call.1} parent=5 // pred_fallthru
        _
      %p233 = scmp.le.s32.totalorder 1, %s19
      %p234 = scmp.lt.s32.totalorder %s19, 3
      %p235 = pnand %p233, %p234
      %p236 = pneg %p235
      // Predicated region
      $region33: #{tpu_custom_call.1} parent=5 // pred_check
        _
      $region34: #{tpu_custom_call.1} parent=5 // pred_check_branch
        %238 = sbr.rel (%p235) target = $region36
      $region35: #{tpu_custom_call.1} parent=5 // pred_region
        %s239 = ssub.s32 %s19, 1
        %s240 = sand.u32 %s46, 1
        %s241 = scalar_lea.sflag [#allocation3], %s240
        %s242 = sand.u32 %s46, 1
        %s243 = smul.addr %s242, 24
        %s244 = scalar_lea.vmem [#allocation2], %s243
        // Predicated region
        $region37: #{tpu_custom_call.1} parent=35 // pred_check
          %p245 = pneg %p59
        $region38: #{tpu_custom_call.1} parent=35 // pred_check_branch
          %247 = sbr.rel (%p245) target = $region40
        $region39: #{tpu_custom_call.1} parent=35 // pred_region
          %248 = dma.done %s241, 384
        $region40: #{tpu_custom_call.1} parent=35 // pred_fallthru
          _
        %s249 = sand.u32 %s78, 1
        %s250 = scalar_lea.sflag [#allocation6], %s249
        %s251 = sand.u32 %s78, 1
        %s252 = smul.addr %s251, 8
        %s253 = scalar_lea.vmem [#allocation5], %s252
        // Predicated region
        $region41: #{tpu_custom_call.1} parent=35 // pred_check
          %p254 = pneg %p91
        $region42: #{tpu_custom_call.1} parent=35 // pred_check_branch
          %256 = sbr.rel (%p254) target = $region44
        $region43: #{tpu_custom_call.1} parent=35 // pred_region
          %257 = dma.done %s250, 128
        $region44: #{tpu_custom_call.1} parent=35 // pred_fallthru
          _
        %s258 = sand.u32 %s46, 1
        %s259 = scalar_lea.sflag [#allocation3], %s258
        %s260 = sand.u32 %s46, 1
        %s261 = smul.addr %s260, 24
        %s262 = scalar_lea.vmem [#allocation2], %s261
        %p263 = pneg %p59
        %p264 = pneg %p56
        %s265 = sand.u32 %s78, 1
        %s266 = scalar_lea.sflag [#allocation6], %s265
        %s267 = sand.u32 %s78, 1
        %s268 = smul.addr %s267, 8
        %s269 = scalar_lea.vmem [#allocation5], %s268
        %p270 = pneg %p91
        %p271 = pneg %p88
        %p272 = pneg %p112
        %p273 = pneg %p109
        %p274 = pneg %p133
        %p275 = pneg %p130
        %p276 = pneg %p161
        %p277 = pneg %p158
        %s278 = sand.u32 %s148, 1
        %s279 = scalar_lea.sflag [#allocation4], %s278
        %s280 = sand.u32 %s148, 1
        %s281 = smul.addr %s280, 48
        %s282 = scalar_lea.vmem [#allocation7], %s281
        %s283 = smul.u32 3, %s29
        %s284 = sadd.s32 %s29, 1
        %s285 = smul.u32 %s284, 3
        %s286 = smul.u32 3, %s29
        %v288 = vld [vmem:[%s244] sm:$0xff]
        %v289 = vld [vmem:[%s244 + $0x8] sm:$0xf]
        %v290 = vld [vmem:[%s244 + $0xc] sm:$0xff]
        %v291 = vld [vmem:[%s244 + $0x14] sm:$0xf]
        %v292 = vld [vmem:[%s253] sm:$0xf]
        %v293 = vld [vmem:[%s253 + $0x4] sm:$0xf]
        %v298 = vunpack.c.l.b16 %v288
        %v299 = vunpack.c.h.b16 %v288
        %v300 = vunpack.c.l.b16 %v289
        %v301 = vunpack.c.l.b16 %v290
        %v302 = vunpack.c.h.b16 %v290
        %v303 = vunpack.c.l.b16 %v291
        %v304 = vpack.c.b16 %v301, %v298
        %v305 = vpack.c.b16 %v302, %v299
        %v306 = vpack.c.b16 %v303, %v300
        %v312 = vunpack.c.l.b16 %v292
        %v313 = vunpack.c.l.b16 %v293
        %v314 = vpack.c.b16 %v313, %v312
        %315 = vrot.lane.b32.xlu0 %v304, 127
        %v316 = vpop.permute.xlu0 %315
        %317 = vrot.lane.b32.xlu0 %v305, 127
        %v318 = vpop.permute.xlu0 %317
        %319 = vrot.lane.b32.xlu0 %v306, 127
        %v320 = vpop.permute.xlu0 %319
        %321 = vrot.lane.b32.xlu0 %v314, 127
        %v322 = vpop.permute.xlu0 %321
        %vm323 = vcmask 1039360
        %v324 = vsel %vm323, %v316, %v318
        %v325 = vsel %vm323, %v318, %v320
        %v326 = vsel %vm323, %v320, %v322
        %330 = vrot.lane.b32.xlu0 %v304, 126
        %v331 = vpop.permute.xlu0 %330
        %332 = vrot.lane.b32.xlu0 %v305, 126
        %v333 = vpop.permute.xlu0 %332
        %334 = vrot.lane.b32.xlu0 %v306, 126
        %v335 = vpop.permute.xlu0 %334
        %336 = vrot.lane.b32.xlu0 %v314, 126
        %v337 = vpop.permute.xlu0 %336
        %vm338 = vcmask 1031168
        %v339 = vsel %vm338, %v331, %v333
        %v340 = vsel %vm338, %v333, %v335
        %v341 = vsel %vm338, %v335, %v337
        %345 = vrot.lane.b32.xlu0 %v304, 110
        %v346 = vpop.permute.xlu0 %345
        %347 = vrot.lane.b32.xlu0 %v305, 110
        %v348 = vpop.permute.xlu0 %347
        %349 = vrot.lane.b32.xlu0 %v306, 110
        %v350 = vpop.permute.xlu0 %349
        %351 = vrot.lane.b32.xlu0 %v314, 110
        %v352 = vpop.permute.xlu0 %351
        %vm353 = vcmask 900096
        %v354 = vsel %vm353, %v346, %v348
        %v355 = vsel %vm353, %v348, %v350
        %v356 = vsel %vm353, %v350, %v352
        %360 = vrot.lane.b32.xlu0 %v304, 109
        %v361 = vpop.permute.xlu0 %360
        %362 = vrot.lane.b32.xlu0 %v305, 109
        %v363 = vpop.permute.xlu0 %362
        %364 = vrot.lane.b32.xlu0 %v306, 109
        %v365 = vpop.permute.xlu0 %364
        %366 = vrot.lane.b32.xlu0 %v314, 109
        %v367 = vpop.permute.xlu0 %366
        %vm368 = vcmask 891904
        %v369 = vsel %vm368, %v361, %v363
        %v370 = vsel %vm368, %v363, %v365
        %v371 = vsel %vm368, %v365, %v367
        %375 = vrot.lane.b32.xlu0 %v304, 108
        %v376 = vpop.permute.xlu0 %375
        %377 = vrot.lane.b32.xlu0 %v305, 108
        %v378 = vpop.permute.xlu0 %377
        %379 = vrot.lane.b32.xlu0 %v306, 108
        %v380 = vpop.permute.xlu0 %379
        %381 = vrot.lane.b32.xlu0 %v314, 108
        %v382 = vpop.permute.xlu0 %381
        %vm383 = vcmask 883712
        %v384 = vsel %vm383, %v376, %v378
        %v385 = vsel %vm383, %v378, %v380
        %v386 = vsel %vm383, %v380, %v382
        %390 = vrot.lane.b32.xlu0 %v304, 92
        %v391 = vpop.permute.xlu0 %390
        %392 = vrot.lane.b32.xlu0 %v305, 92
        %v393 = vpop.permute.xlu0 %392
        %394 = vrot.lane.b32.xlu0 %v306, 92
        %v395 = vpop.permute.xlu0 %394
        %396 = vrot.lane.b32.xlu0 %v314, 92
        %v397 = vpop.permute.xlu0 %396
        %vm398 = vcmask 752640
        %v399 = vsel %vm398, %v391, %v393
        %v400 = vsel %vm398, %v393, %v395
        %v401 = vsel %vm398, %v395, %v397
        %405 = vrot.lane.b32.xlu0 %v304, 91
        %v406 = vpop.permute.xlu0 %405
        %407 = vrot.lane.b32.xlu0 %v305, 91
        %v408 = vpop.permute.xlu0 %407
        %409 = vrot.lane.b32.xlu0 %v306, 91
        %v410 = vpop.permute.xlu0 %409
        %411 = vrot.lane.b32.xlu0 %v314, 91
        %v412 = vpop.permute.xlu0 %411
        %vm413 = vcmask 744448
        %v414 = vsel %vm413, %v406, %v408
        %v415 = vsel %vm413, %v408, %v410
        %v416 = vsel %vm413, %v410, %v412
        %420 = vrot.lane.b32.xlu0 %v304, 90
        %v421 = vpop.permute.xlu0 %420
        %422 = vrot.lane.b32.xlu0 %v305, 90
        %v423 = vpop.permute.xlu0 %422
        %424 = vrot.lane.b32.xlu0 %v306, 90
        %v425 = vpop.permute.xlu0 %424
        %426 = vrot.lane.b32.xlu0 %v314, 90
        %v427 = vpop.permute.xlu0 %426
        %vm428 = vcmask 736256
        %v429 = vsel %vm428, %v421, %v423
        %v430 = vsel %vm428, %v423, %v425
        %v431 = vsel %vm428, %v425, %v427
        %v435 = vld [vmem:[%s2] sm:$0xff]
        %v436 = vld [vmem:[%s2 + $0x8] sm:$0xff]
        %v437 = vld [vmem:[%s3] sm:$0xff]
        %v438 = vld [vmem:[%s3 + $0x8] sm:$0xff]
        %440 = vset.pattern.permute.xlu0 0
        %441 = vperm.xlu0 %440, %v437
        %v442 = vpop.permute.xlu0 %441
        %445 = vset.pattern.permute.xlu0 0
        %446 = vperm.xlu0 %445, %v438
        %v447 = vpop.permute.xlu0 %446
        %v451 = vunpack.c.l.b16 %v435
        %v452 = vunpack.c.h.b16 %v435
        %v453 = vunpack.c.l.b16 %v436
        %v454 = vunpack.c.h.b16 %v436
        %v455 = vpack.c.b16 %v453, %v451
        %v456 = vpack.c.b16 %v454, %v452
        %vm458 = vcmask 130048
        %v460 = vsel %vm458, %v456, 0
        %462 = vmatprep.subr.bf16.mxu0 %v305
        %463 = vmatpush1.bf16.msra.mxu0 %v304
        %464 = vmatprep.subr.bf16.mxu0 %v325
        %465 = vmatpush1.bf16.msra.mxu0 %v324
        %466 = vmatprep.subr.bf16.mxu0 %v340
        %467 = vmatpush1.bf16.msra.mxu0 %v339
        %468 = vmatprep.subr.bf16.mxu0 %v355
        %469 = vmatpush1.bf16.msra.mxu0 %v354
        %470 = vmatprep.subr.bf16.mxu0 %v370
        %471 = vmatpush1.bf16.msra.mxu0 %v369
        %472 = vmatprep.subr.bf16.mxu0 %v385
        %473 = vmatpush1.bf16.msra.mxu0 %v384
        %474 = vmatprep.subr.bf16.mxu0 %v400
        %475 = vmatpush1.bf16.msra.mxu0 %v399
        %476 = vmatprep.subr.bf16.mxu0 %v415
        %477 = vmatpush1.bf16.msra.mxu0 %v414
        %478 = vmatprep.subr.bf16.mxu0 %v430
        %479 = vmatpush1.bf16.msra.mxu0 %v429
        %480 = vmatprep.subr.bf16.mxu0 0
        %481 = vmatpush1.bf16.msra.mxu0 0
        %482 = vmatprep.subr.bf16.mxu0 0
        %483 = vmatpush1.bf16.msra.mxu0 0
        %484 = vmatprep.subr.bf16.mxu0 0
        %485 = vmatpush1.bf16.msra.mxu0 0
        %486 = vmatprep.subr.bf16.mxu0 0
        %487 = vmatpush1.bf16.msra.mxu0 0
        %488 = vmatprep.subr.bf16.mxu0 0
        %489 = vmatpush1.bf16.msra.mxu0 0
        %490 = vmatprep.subr.bf16.mxu0 0
        %491 = vmatpush1.bf16.msra.mxu0 0
        %492 = vmatprep.subr.bf16.mxu0 0
        %493 = vmatpush1.bf16.msra.mxu0 0
        %494 = vmatprep.mubr.bf16.mxu0 %v460
        %495 = vmatmul.mubr.bf16.gmra.mrb[0].mxu0 %v455
        %v496 = vpop.f32.mrb[0].mxu0
        %v497 = vadd.f32 %v442, %v496
        %v498 = vpop.f32.mrb[0].mxu0
        %v499 = vadd.f32 %v442, %v498
        %v500 = vpop.f32.mrb[0].mxu0
        %v501 = vadd.f32 %v447, %v500
        %v502 = vpop.f32.mrb[0].mxu0
        %v503 = vadd.f32 %v447, %v502
        %504 = vdwg.mxu0
        %505 = vmatprep.subr.bf16.mxu0 0
        %506 = vmatpush1.bf16.msra.mxu0 %v306
        %507 = vmatprep.subr.bf16.mxu0 0
        %508 = vmatpush1.bf16.msra.mxu0 %v326
        %509 = vmatprep.subr.bf16.mxu0 0
        %510 = vmatpush1.bf16.msra.mxu0 %v341
        %511 = vmatprep.subr.bf16.mxu0 0
        %512 = vmatpush1.bf16.msra.mxu0 %v356
        %513 = vmatprep.subr.bf16.mxu0 0
        %514 = vmatpush1.bf16.msra.mxu0 %v371
        %515 = vmatprep.subr.bf16.mxu0 0
        %516 = vmatpush1.bf16.msra.mxu0 %v386
        %517 = vmatprep.subr.bf16.mxu0 0
        %518 = vmatpush1.bf16.msra.mxu0 %v401
        %519 = vmatprep.subr.bf16.mxu0 0
        %520 = vmatpush1.bf16.msra.mxu0 %v416
        %521 = vmatprep.subr.bf16.mxu0 0
        %522 = vmatpush1.bf16.msra.mxu0 %v431
        %523 = vmatprep.subr.bf16.mxu0 0
        %524 = vmatpush1.bf16.msra.mxu0 0
        %525 = vmatprep.subr.bf16.mxu0 0
        %526 = vmatpush1.bf16.msra.mxu0 0
        %527 = vmatprep.subr.bf16.mxu0 0
        %528 = vmatpush1.bf16.msra.mxu0 0
        %529 = vmatprep.subr.bf16.mxu0 0
        %530 = vmatpush1.bf16.msra.mxu0 0
        %531 = vmatprep.subr.bf16.mxu0 0
        %532 = vmatpush1.bf16.msra.mxu0 0
        %533 = vmatprep.subr.bf16.mxu0 0
        %534 = vmatpush1.bf16.msra.mxu0 0
        %535 = vmatprep.subr.bf16.mxu0 0
        %536 = vmatpush1.bf16.msra.mxu0 0
        %537 = vmatprep.mubr.bf16.mxu0 %v460
        %538 = vmatmul.mubr.bf16.gmra.mrb[0].mxu0 %v455
        %v539 = vpop.f32.mrb[0].mxu0
        %v540 = vadd.f32 %v442, %v539
        %v541 = vpop.f32.mrb[0].mxu0
        %v542 = vpop.f32.mrb[0].mxu0
        %v543 = vadd.f32 %v447, %v542
        %v544 = vpop.f32.mrb[0].mxu0
        %545 = vdwg.mxu0
        %v546 = vmax.f32 %v497, %v501
        %v547 = vmax.f32 %v499, %v503
        %v548 = vmax.f32 %v540, %v543
        %549 = vst [vmem:[%s282] sm:$0xff] %v546
        %550 = vst [vmem:[%s282 + $0x8] sm:$0xff] %v547
        %551 = vst [vmem:[%s282 + $0x10] sm:$0xff] %v548
        %v552 = vmin.f32 %v497, %v501
        %v553 = vmin.f32 %v499, %v503
        %v554 = vmin.f32 %v540, %v543
        %555 = vst [vmem:[%s282 + $0x18] sm:$0xff] %v552
        %556 = vst [vmem:[%s282 + $0x20] sm:$0xff] %v553
        %557 = vst [vmem:[%s282 + $0x28] sm:$0xff] %v554
        %s558 = sand.u32 %s148, 1
        %s559 = scalar_lea.sflag [#allocation4], %s558
        %s560 = sand.u32 %s148, 1
        %s561 = smul.addr %s560, 48
        %s562 = scalar_lea.vmem [#allocation7], %s561
        // Predicated region
        $region45: #{tpu_custom_call.1} parent=35 // pred_check
          %p563 = pneg %p158
        $region46: #{tpu_custom_call.1} parent=35 // pred_check_branch
          %565 = sbr.rel (%p563) target = $region48
        $region47: #{tpu_custom_call.1} parent=35 // pred_region
          %s566 = smul.u32 3, %s29
          %s568 = ssub.s32 768, 768
          %569 = vsyncadd %s559, %s568
          %s570 = smul.addr %s28, 6
          %s571 = sadd.s32 %s566, %s570
          %s572 = smul.addr %s571, 128
          %s573 = scalar_lea.hbm %s4, %s572
          %s574 = sshll.u32 %s562, 4
          %s575 = int_to_ptr.vmem [resolvable:$true] %s574
          %580 = dma.vmem_to_hbm [thread:$0]  %s575, 768, %s573, %s559, 384, 384, 24
        $region48: #{tpu_custom_call.1} parent=35 // pred_fallthru
          _
      $region36: #{tpu_custom_call.1} parent=5 // pred_fallthru
        _
      %p581 = scmp.le.s32.totalorder 2, %s19
      // Predicated region
      $region49: #{tpu_custom_call.1} parent=5 // pred_check
        %p582 = pneg %p581
      $region50: #{tpu_custom_call.1} parent=5 // pred_check_branch
        %584 = sbr.rel (%p582) target = $region52
      $region51: #{tpu_custom_call.1} parent=5 // pred_region
        %s585 = ssub.s32 %s19, 2
        // Predicated region
        $region53: #{tpu_custom_call.1} parent=51 // pred_check
          %p586 = pneg %p164
        $region54: #{tpu_custom_call.1} parent=51 // pred_check_branch
          %588 = sbr.rel (%p586) target = $region56
        $region55: #{tpu_custom_call.1} parent=51 // pred_region
          %s589 = sand.u32 %s149, 1
          %s590 = scalar_lea.sflag [#allocation4], %s589
          %s591 = sand.u32 %s149, 1
          %s592 = smul.addr %s591, 48
          %s593 = scalar_lea.vmem [#allocation7], %s592
          %594 = dma.done %s590, 768
        $region56: #{tpu_custom_call.1} parent=51 // pred_fallthru
          _
      $region52: #{tpu_custom_call.1} parent=5 // pred_fallthru
        _
    $region6: #{tpu_custom_call.1} parent=1 // loop_footer
      %s23 = sadd.s32 1, %s19
    $region7: #{tpu_custom_call.1} parent=1 // loop_footer_branch
      %18 = sbr.rel target = $region3
    $region8: #{tpu_custom_call.1} parent=1 // loop_exit
      _
    %595 = vsyncpa [#allocation3], 1
    %s596 = scalar_lea.sflag [#allocation3], 1
    %597 = vsyncpa %s596, 1
    %598 = vsyncpa [#allocation6], 1
    %s599 = scalar_lea.sflag [#allocation6], 1
    %600 = vsyncpa %s599, 1
    %601 = vsyncpa [#allocation4], 1
    %s602 = scalar_lea.sflag [#allocation4], 1
    %603 = vsyncpa %s602, 1

</llo_original>
